<compile_context>
chip_gen: v7x
topology: tpu7x:2x2x1
jax: 0.10.0
libtpu: 0.0.40
codegen_flags: <defaults>
</compile_context>

<pallas_src>
import math

import jax
import jax.numpy as jnp
from jax.experimental import pallas as pl
from jax.experimental.pallas import tpu as pltpu


# ---------------------------------------------------------------------------
# helpers
# ---------------------------------------------------------------------------

_SQRT_2_OVER_PI = math.sqrt(2.0 / math.pi)


def _gelu_tanh(x):
    """PyTorch F.gelu(..., approximate='tanh')."""
    return 0.5 * x * (1.0 + jnp.tanh(_SQRT_2_OVER_PI * (x + 0.044715 * x * x * x)))


def _round_up(x, m):
    return ((x + m - 1) // m) * m


def _buffered_supported():
    try:
        pl.BlockSpec((8, 128), lambda i: (0, 0), pipeline_mode=pl.Buffered(3))
        return True
    except Exception:
        return False


_BUFFERED_OK = _buffered_supported()


def _hw_config():
    """Best-effort TPU-generation detection with conservative fallbacks."""
    kind = ""
    try:
        kind = jax.devices()[0].device_kind.lower()
    except Exception:
        pass
    vmem_cap = None
    try:
        vmem_cap = int(pltpu.get_tpu_info().vmem_capacity_bytes)
    except Exception:
        vmem_cap = None

    if "v7" in kind:
        gen, cores = "v7x", 2
        vmem_cap = vmem_cap or (64 << 20)
        tm, th = 512, 1024
    elif "v6" in kind:
        gen, cores = "v6e", 1
        vmem_cap = vmem_cap or (128 << 20)
        tm, th = 1024, 2048
    elif "v5" in kind:
        gen, cores = "v5e", 1
        vmem_cap = vmem_cap or (128 << 20)
        tm, th = 256, 4096
    else:
        gen, cores = "unknown", 1
        vmem_cap = vmem_cap or (64 << 20)
        tm, th = 512, 1024
    return dict(gen=gen, cores=cores, vmem_cap=vmem_cap, tm=tm, th=th)


# ---------------------------------------------------------------------------
# kernel
# ---------------------------------------------------------------------------

def _make_ffn_kernel(n_sub, th_sub, acc_in_scratch):
    """Kernel over grid (M tiles, hidden tiles).  Hidden axis is a reduction:
    acc += gelu(x @ w1[:, k] + b1[k]) @ w2[k, :]; bias2 + cast at the last k."""

    def kernel(x_ref, w1_ref, b1_ref, w2_ref, b2_ref, o_ref, *scratch):
        acc_ref = scratch[0] if acc_in_scratch else o_ref
        k = pl.program_id(1)

        @pl.when(k == 0)
        def _init():
            acc_ref[...] = jnp.zeros_like(acc_ref)

        x = x_ref[...]
        # Sub-chunk the hidden slice so the GELU (VPU/EUP) of chunk j can be
        # overlapped with the MXU matmuls of neighbouring chunks.  n_sub and
        # th_sub are static python ints -> static ref views, no dynamic lane
        # slicing.
        for j in range(n_sub):
            off = j * th_sub
            h = jnp.dot(x, w1_ref[:, pl.ds(off, th_sub)],
                        preferred_element_type=jnp.float32)
            h = _gelu_tanh(h + b1_ref[:, pl.ds(off, th_sub)].astype(jnp.float32))
            acc_ref[...] += jnp.dot(h.astype(w2_ref.dtype),
                                    w2_ref[pl.ds(off, th_sub), :],
                                    preferred_element_type=jnp.float32)

        @pl.when(k == pl.num_programs(1) - 1)
        def _finalize():
            o_ref[...] = (acc_ref[...]
                          + b2_ref[...].astype(jnp.float32)).astype(o_ref.dtype)

    return kernel


# ---------------------------------------------------------------------------
# wrapper
# ---------------------------------------------------------------------------

def make_feed_forward(w1, b1, w2, b2, *, tm=None, th=None,
                      compute_dtype=jnp.bfloat16, out_dtype=None,
                      n_sub=None, weight_buffers=None):
    """Build fused FeedForward: y = gelu_tanh(x @ w1 + b1) @ w2 + b2.

    Weights are padded / cast to the MXU dtype ONCE here (hoisted out of the
    per-call hot path).  Returns apply(x): (B, S, dim) -> (B, S, dim_out).
    MXU operands default to bfloat16; accumulation / bias / GELU stay in f32.
    """
    dim, hidden = w1.shape
    dim_out = w2.shape[1]
    assert w2.shape[0] == hidden
    assert b1.shape == (hidden,) and b2.shape == (dim_out,)

    hw = _hw_config()
    cdt = jnp.dtype(compute_dtype)
    itc = cdt.itemsize
    SUB = 16  # sublane multiple safe for f32 and packed bf16

    dim_p = _round_up(dim, 128)
    do_p = _round_up(dim_out, 128)

    tm_cap = tm if tm is not None else hw["tm"]
    tm_cap = max(SUB, _round_up(tm_cap, SUB))
    th_eff = th if th is not None else hw["th"]
    th_eff = max(128, _round_up(min(th_eff, _round_up(hidden, 128)), 128))

    wbuf = weight_buffers
    if wbuf is None:
        wbuf = 3 if (hw["vmem_cap"] >= (100 << 20) and _BUFFERED_OK) else 2
    if wbuf > 2 and not _BUFFERED_OK:
        wbuf = 2

    def _budget(tm_e, th_e, wb, acc_scratch, ito=4):
        x_t = tm_e * dim_p * itc
        w1_t = dim_p * th_e * itc
        w2_t = th_e * do_p * itc
        b_t = 8 * th_e * 4 + 8 * do_p * 4          # bias tiles (sublane-padded)
        out_t = tm_e * do_p * ito
        total = 2 * (x_t + b_t + out_t) + wb * (w1_t + w2_t)
        if acc_scratch:
            total += tm_e * do_p * 4
        return total

    # Shrink until the worst-case (scratch-accumulator, f32 out) tile budget
    # fits comfortably inside this generation's physical VMEM.
    cap_target = int(hw["vmem_cap"] * 0.8)
    while _budget(tm_cap, th_eff, wbuf, True) > cap_target:
        if wbuf > 2:
            wbuf = 2
        elif th_eff > 512:
            th_eff = max(128, _round_up(th_eff // 2, 128))
        elif tm_cap > 4 * SUB:
            tm_cap = max(SUB, _round_up(tm_cap // 2, SUB))
        elif th_eff > 128:
            th_eff = max(128, _round_up(th_eff // 2, 128))
        else:
            break

    H_pad = _round_up(hidden, th_eff)
    n_k = H_pad // th_eff

    if n_sub is None:
        n_sub_eff = 1
        for n in (4, 2):
            sub = th_eff // n
            if th_eff % n == 0 and sub % 128 == 0 and sub >= 256:
                n_sub_eff = n
                break
    else:
        n_sub_eff = n_sub
    assert th_eff % n_sub_eff == 0 and (th_eff // n_sub_eff) % 128 == 0
    th_sub = th_eff // n_sub_eff

    # --- weight prep: pad + cast ONCE (out of the per-call hot path). -------
    # Zero-padding is exact: padded x cols / w1 rows are 0; padded hidden cols
    # have b1 = 0 so gelu(0) = 0 and meet zero w2 rows; padded out cols /
    # padded M rows are sliced off in apply().
    w1p = jnp.pad(w1.astype(cdt), ((0, dim_p - dim), (0, H_pad - hidden)))
    b1p = jnp.pad(b1.astype(jnp.float32), (0, H_pad - hidden)).reshape(1, H_pad)
    w2p = jnp.pad(w2.astype(cdt), ((0, H_pad - hidden), (0, do_p - dim_out)))
    b2p = jnp.pad(b2.astype(jnp.float32), (0, do_p - dim_out)).reshape(1, do_p)

    weight_bytes = (w1p.size + w2p.size) * itc + (b1p.size + b2p.size) * 4

    def _weight_spec(shape, index_map):
        if wbuf > 2 and _BUFFERED_OK:
            return pl.BlockSpec(shape, index_map, pipeline_mode=pl.Buffered(wbuf))
        return pl.BlockSpec(shape, index_map)

    def apply(x):
        B, S, d_in = x.shape
        assert d_in == dim, f"expected last dim {dim}, got {d_in}"
        odt = jnp.dtype(out_dtype) if out_dtype is not None else x.dtype
        ito = odt.itemsize
        M = B * S

        # Large row tiles (weight reuse across rows), padded to a sublane
        # multiple so output stores are unmasked, lane-dense vst's.
        tm_eff = max(SUB, _round_up(min(tm_cap, _round_up(M, SUB)), SUB))
        n_m = -(-M // tm_eff)
        # On dual-TensorCore parts (v7x) keep an even number of M tiles so the
        # "parallel" axis shards evenly across both cores.
        if hw["cores"] >= 2 and n_m % 2 == 1 and M > SUB:
            n_m += 1
            tm_eff = max(SUB, _round_up(-(-M // n_m), SUB))
        M_pad = n_m * tm_eff

        # Accumulate directly into the resident output tile when it is f32:
        # saves an always-live tm x do_p f32 scratch (VMEM headroom on v7x).
        acc_in_scratch = (odt != jnp.dtype(jnp.float32))

        x2d = jnp.pad(x.reshape(M, dim).astype(cdt),
                      ((0, M_pad - M), (0, dim_p - dim)))

        budget = _budget(tm_eff, th_eff, wbuf, acc_in_scratch, ito)
        vmem_limit = min(int(budget * 1.25) + (4 << 20),
                         int(hw["vmem_cap"] * 0.9))
        vmem_limit = max(vmem_limit, min(32 << 20, int(hw["vmem_cap"] * 0.9)))

        cost = pl.CostEstimate(
            flops=2 * M * dim * hidden + 2 * M * hidden * dim_out,
            transcendentals=M * hidden,
            # Weights are re-streamed from HBM once per M tile.
            bytes_accessed=(x2d.size * itc + M_pad * do_p * ito
                            + n_m * weight_bytes),
        )

        kernel = _make_ffn_kernel(n_sub_eff, th_sub, acc_in_scratch)
        scratch = ([pltpu.VMEM((tm_eff, do_p), jnp.float32)]
                   if acc_in_scratch else [])

        out2d = pl.pallas_call(
            kernel,
            out_shape=jax.ShapeDtypeStruct((M_pad, do_p), odt),
            grid_spec=pltpu.PrefetchScalarGridSpec(
                num_scalar_prefetch=0,
                grid=(n_m, n_k),
                in_specs=[
                    pl.BlockSpec((tm_eff, dim_p), lambda i, k: (i, 0)),   # x rows
                    _weight_spec((dim_p, th_eff), lambda i, k: (0, k)),   # w1 slice
                    pl.BlockSpec((1, th_eff), lambda i, k: (0, k)),       # b1 slice
                    _weight_spec((th_eff, do_p), lambda i, k: (k, 0)),    # w2 slice
                    pl.BlockSpec((1, do_p), lambda i, k: (0, 0)),         # b2
                ],
                out_specs=pl.BlockSpec((tm_eff, do_p), lambda i, k: (i, 0)),
                scratch_shapes=scratch,
            ),
            compiler_params=pltpu.CompilerParams(
                dimension_semantics=("parallel", "arbitrary"),
                vmem_limit_bytes=vmem_limit),
            cost_estimate=cost,
        )(x2d, w1p, b1p, w2p, b2p)

        return out2d[:M, :dim_out].reshape(B, S, dim_out)

    return apply


def feed_forward(x, w1, b1, w2, b2, **kwargs):
    """Convenience one-shot wrapper (re-preps weights every call)."""
    return make_feed_forward(w1, b1, w2, b2, **kwargs)(x)


def feed_forward_ref(x, w1, b1, w2, b2):
    h = jnp.einsum("bsd,dh->bsh", x, w1) + b1
    h = _gelu_tanh(h)
    return jnp.einsum("bsh,ho->bso", h, w2) + b2


# ---------------------------------------------------------------------------
# tests
# ---------------------------------------------------------------------------

if __name__ == "__main__":
    # Small shapes consistent with FeedForward(dim, dim_out): hidden = 4*dim.
    B, S, dim, dim_out = 2, 8, 32, 32
    hidden = dim * 4  # 128

    key = jax.random.PRNGKey(0)
    kx, kw1, kb1, kw2, kb2 = jax.random.split(key, 5)

    x = jax.random.normal(kx, (B, S, dim), dtype=jnp.float32)
    # nn.Linear default init (uniform +-1/sqrt(fan_in))
    w1 = jax.random.uniform(kw1, (dim, hidden), jnp.float32,
                            -1.0 / math.sqrt(dim), 1.0 / math.sqrt(dim))
    b1 = jax.random.uniform(kb1, (hidden,), jnp.float32,
                            -1.0 / math.sqrt(dim), 1.0 / math.sqrt(dim))
    w2 = jax.random.uniform(kw2, (hidden, dim_out), jnp.float32,
                            -1.0 / math.sqrt(hidden), 1.0 / math.sqrt(hidden))
    b2 = jax.random.uniform(kb2, (dim_out,), jnp.float32,
                            -1.0 / math.sqrt(hidden), 1.0 / math.sqrt(hidden))

    ref = feed_forward_ref(x, w1, b1, w2, b2)

    # 1) exact f32 MXU-operand path (also exercises accumulate-into-output).
    ffn_f32 = make_feed_forward(w1, b1, w2, b2, compute_dtype=jnp.float32)
    out = jax.block_until_ready(ffn_f32(x))
    assert out.shape == (B, S, dim_out)
    assert jnp.allclose(out, ref, atol=1e-5, rtol=1e-5), "f32 mismatch vs ref"

    # 2) default path: bf16 MXU operands, f32 accumulation (loose tolerance).
    ffn_bf16 = make_feed_forward(w1, b1, w2, b2)  # compute_dtype=bfloat16
    out_bf16 = jax.block_until_ready(ffn_bf16(x))
    assert out_bf16.dtype == x.dtype
    assert jnp.allclose(out_bf16, ref, atol=1e-1, rtol=1e-1), "bf16 mismatch"

    # 3) bf16 output dtype (exercises the VMEM-scratch accumulator path).
    ffn_bf16o = make_feed_forward(w1, b1, w2, b2, out_dtype=jnp.bfloat16)
    out_bf16o = jax.block_until_ready(ffn_bf16o(x))
    assert out_bf16o.dtype == jnp.bfloat16
    assert jnp.allclose(out_bf16o.astype(jnp.float32), ref,
                        atol=1e-1, rtol=1e-1), "bf16-out mismatch"

    # 4) ragged M (exercises row padding / even-tile logic on 2-core parts).
    x3 = jax.random.normal(kx, (B, 9, dim), dtype=jnp.float32)
    out3 = jax.block_until_ready(ffn_f32(x3))
    ref3 = feed_forward_ref(x3, w1, b1, w2, b2)
    assert jnp.allclose(out3, ref3, atol=1e-5, rtol=1e-5), "padded-M mismatch"

    print("KERNEL_OK")
</pallas_src>

<mosaic_0001>
module attributes {stable_mosaic.version = 11 : i64} {
  func.func @kernel(%arg0: i32, %arg1: i32, %arg2: memref<16x128xf32, #tpu.memory_space<vmem>>, %arg3: memref<128x128xf32, #tpu.memory_space<vmem>>, %arg4: memref<1x128xf32, #tpu.memory_space<vmem>>, %arg5: memref<128x128xf32, #tpu.memory_space<vmem>>, %arg6: memref<1x128xf32, #tpu.memory_space<vmem>>, %arg7: memref<16x128xf32, #tpu.memory_space<vmem>>) attributes {dimension_semantics = [#tpu.dimension_semantics<parallel>, #tpu.dimension_semantics<arbitrary>], iteration_bounds = array<i64: 1, 1>, scalar_prefetch = 0 : i64, scratch_operands = 0 : i64, tpu.core_type = #tpu.core_type<tc>, window_params = [{transform_indices = @transform_0, window_bounds = array<i64: 16, 128>}, {transform_indices = @transform_1, window_bounds = array<i64: 128, 128>}, {transform_indices = @transform_2, window_bounds = array<i64: 1, 128>}, {transform_indices = @transform_3, window_bounds = array<i64: 128, 128>}, {pipeline_mode = #tpu.pipeline_mode<synchronous>, transform_indices = @transform_4, window_bounds = array<i64: 1, 128>}, {transform_indices = @transform_5, window_bounds = array<i64: 16, 128>}]} {
    %c0_i32 = arith.constant 0 : i32
    %0 = arith.cmpi eq, %arg1, %c0_i32 : i32
    %1 = arith.extui %0 : i1 to i32
    %c0_i32_0 = arith.constant 0 : i32
    %2 = arith.cmpi ne, %1, %c0_i32_0 : i32
    scf.if %2 {
      %cst_19 = arith.constant 0.000000e+00 : f32
      %30 = vector.broadcast %cst_19 : f32 to vector<16x128xf32>
      %c0_20 = arith.constant 0 : index
      %c0_21 = arith.constant 0 : index
      %31 = vector.load %arg7[%c0_20, %c0_21] : memref<16x128xf32, #tpu.memory_space<vmem>>, vector<16x128xf32>
      tpu.vector_store %arg7[%c0_20, %c0_21], %30 {strides = array<i32>} : memref<16x128xf32, #tpu.memory_space<vmem>>, vector<16x128xf32>,
    } else {
    }
    %c0 = arith.constant 0 : index
    %c0_1 = arith.constant 0 : index
    %3 = vector.load %arg2[%c0, %c0_1] : memref<16x128xf32, #tpu.memory_space<vmem>>, vector<16x128xf32>
    %c0_2 = arith.constant 0 : index
    %c0_3 = arith.constant 0 : index
    %4 = vector.load %arg3[%c0_2, %c0_3] : memref<128x128xf32, #tpu.memory_space<vmem>>, vector<128x128xf32>
    %cst = arith.constant dense<0.000000e+00> : vector<16x128xf32>
    %5 = tpu.matmul %3, %4, %cst {dimension_numbers = #tpu.dot_dimension_numbers<[1], [0], [0], [1], [0, 0, 1, 1], [], []>} : vector<16x128xf32>, vector<128x128xf32>, vector<16x128xf32> -> vector<16x128xf32>
    %c0_4 = arith.constant 0 : index
    %c0_5 = arith.constant 0 : index
    %6 = vector.load %arg4[%c0_4, %c0_5] : memref<1x128xf32, #tpu.memory_space<vmem>>, vector<1x128xf32>
    %7 = vector.broadcast %6 : vector<1x128xf32> to vector<16x128xf32>
    %8 = arith.addf %5, %7 : vector<16x128xf32>
    %cst_6 = arith.constant 5.000000e-01 : f32
    %9 = vector.broadcast %cst_6 : f32 to vector<16x128xf32>
    %10 = arith.mulf %9, %8 : vector<16x128xf32>
    %cst_7 = arith.constant 4.471500e-02 : f32
    %11 = vector.broadcast %cst_7 : f32 to vector<16x128xf32>
    %12 = arith.mulf %11, %8 : vector<16x128xf32>
    %13 = arith.mulf %12, %8 : vector<16x128xf32>
    %14 = arith.mulf %13, %8 : vector<16x128xf32>
    %15 = arith.addf %8, %14 : vector<16x128xf32>
    %cst_8 = arith.constant 0.797884583 : f32
    %16 = vector.broadcast %cst_8 : f32 to vector<16x128xf32>
    %17 = arith.mulf %16, %15 : vector<16x128xf32>
    %18 = math.tanh %17 : vector<16x128xf32>
    %cst_9 = arith.constant 1.000000e+00 : f32
    %19 = vector.broadcast %cst_9 : f32 to vector<16x128xf32>
    %20 = arith.addf %19, %18 : vector<16x128xf32>
    %21 = arith.mulf %10, %20 : vector<16x128xf32>
    %c0_10 = arith.constant 0 : index
    %c0_11 = arith.constant 0 : index
    %22 = vector.load %arg7[%c0_10, %c0_11] : memref<16x128xf32, #tpu.memory_space<vmem>>, vector<16x128xf32>
    %c0_12 = arith.constant 0 : index
    %c0_13 = arith.constant 0 : index
    %23 = vector.load %arg5[%c0_12, %c0_13] : memref<128x128xf32, #tpu.memory_space<vmem>>, vector<128x128xf32>
    %cst_14 = arith.constant dense<0.000000e+00> : vector<16x128xf32>
    %24 = tpu.matmul %21, %23, %cst_14 {dimension_numbers = #tpu.dot_dimension_numbers<[1], [0], [0], [1], [0, 0, 1, 1], [], []>} : vector<16x128xf32>, vector<128x128xf32>, vector<16x128xf32> -> vector<16x128xf32>
    %25 = arith.addf %22, %24 : vector<16x128xf32>
    %c0_15 = arith.constant 0 : index
    %c0_16 = arith.constant 0 : index
    %26 = vector.load %arg7[%c0_15, %c0_16] : memref<16x128xf32, #tpu.memory_space<vmem>>, vector<16x128xf32>
    tpu.vector_store %arg7[%c0_15, %c0_16], %25 {strides = array<i32>} : memref<16x128xf32, #tpu.memory_space<vmem>>, vector<16x128xf32>,
    %c0_i32_17 = arith.constant 0 : i32
    %27 = arith.cmpi eq, %arg1, %c0_i32_17 : i32
    %28 = arith.extui %27 : i1 to i32
    %c0_i32_18 = arith.constant 0 : i32
    %29 = arith.cmpi ne, %28, %c0_i32_18 : i32
    scf.if %29 {
      %c0_19 = arith.constant 0 : index
      %c0_20 = arith.constant 0 : index
      %30 = vector.load %arg7[%c0_19, %c0_20] : memref<16x128xf32, #tpu.memory_space<vmem>>, vector<16x128xf32>
      %c0_21 = arith.constant 0 : index
      %c0_22 = arith.constant 0 : index
      %31 = vector.load %arg6[%c0_21, %c0_22] : memref<1x128xf32, #tpu.memory_space<vmem>>, vector<1x128xf32>
      %32 = vector.broadcast %31 : vector<1x128xf32> to vector<16x128xf32>
      %33 = arith.addf %30, %32 : vector<16x128xf32>
      %c0_23 = arith.constant 0 : index
      %c0_24 = arith.constant 0 : index
      %34 = vector.load %arg7[%c0_23, %c0_24] : memref<16x128xf32, #tpu.memory_space<vmem>>, vector<16x128xf32>
      tpu.vector_store %arg7[%c0_23, %c0_24], %33 {strides = array<i32>} : memref<16x128xf32, #tpu.memory_space<vmem>>, vector<16x128xf32>,
    } else {
    }
    return
  }
  func.func @transform_0(%arg0: i32, %arg1: i32) -> (i32, i32) {
    %c0_i32 = arith.constant 0 : i32
    %c0_i32_0 = arith.constant 0 : i32
    return %arg0, %c0_i32 : i32, i32
  }
  func.func @transform_1(%arg0: i32, %arg1: i32) -> (i32, i32) {
    %c0_i32 = arith.constant 0 : i32
    %c0_i32_0 = arith.constant 0 : i32
    return %c0_i32, %arg1 : i32, i32
  }
  func.func @transform_2(%arg0: i32, %arg1: i32) -> (i32, i32) {
    %c0_i32 = arith.constant 0 : i32
    %c0_i32_0 = arith.constant 0 : i32
    return %c0_i32, %arg1 : i32, i32
  }
  func.func @transform_3(%arg0: i32, %arg1: i32) -> (i32, i32) {
    %c0_i32 = arith.constant 0 : i32
    %c0_i32_0 = arith.constant 0 : i32
    return %arg1, %c0_i32 : i32, i32
  }
  func.func @transform_4(%arg0: i32, %arg1: i32) -> (i32, i32) {
    %c0_i32 = arith.constant 0 : i32
    %c0_i32_0 = arith.constant 0 : i32
    %c0_i32_1 = arith.constant 0 : i32
    return %c0_i32, %c0_i32_0 : i32, i32
  }
  func.func @transform_5(%arg0: i32, %arg1: i32) -> (i32, i32) {
    %c0_i32 = arith.constant 0 : i32
    %c0_i32_0 = arith.constant 0 : i32
    return %arg0, %c0_i32 : i32, i32
  }
}

</mosaic_0001>

<llo_original>
// kernel: tpu_custom_call.1
$region0: #{tpu_custom_call.1}
  #allocation0 [shape = 'u32[]', space=smem, size = 0x4, offset = 0x4, fixed_abs, tag = 'smem constant byte address 0x4 - core index']
  #allocation1 [shape = 'u32[144,128]{1,0:T(1,128)}', space=vmem, size = 0x12000, scoped, tag = 'internal scratch']
  %s0 = inlined_call_operand.hbm [shape: f32[16,128], index: 0, kind: input, shape index: {}]
  %s1 = inlined_call_operand.hbm [shape: f32[128,128], index: 1, kind: input, shape index: {}]
  %s2 = inlined_call_operand.vmem [shape: f32[1,128], index: 2, kind: input, shape index: {}]
  %s3 = inlined_call_operand.hbm [shape: f32[128,128], index: 3, kind: input, shape index: {}]
  %s4 = inlined_call_operand.vmem [shape: f32[1,128], index: 4, kind: input, shape index: {}]
  %s5 = inlined_call_operand.hbm [shape: f32[16,128], index: 5, kind: output, shape index: {}]
  %s6 = sld [smem:[#allocation0]]
  $region50: #{tpu_custom_call.1} parent=0
    _
  %s8 = ssub.s32 1, %s6
  %s9 = scalar_select 0, %s8, %s6
  $region1: #{tpu_custom_call.1} parent=0
    #allocation2 [shape = 'u8[8192]{0}', space=vmem, size = 0x2000, scoped, tag = 'input window, operand 0, single buffered']
    #allocation3 [shape = 's32[1]{0}', space=sflag, size = 0x4, scoped, tag = 'scoped memory for tpu_custom_call.1']
    #allocation4 [shape = 's32[1]{0}', space=sflag, size = 0x4, scoped, tag = 'scoped memory for tpu_custom_call.1']
    #allocation5 [shape = 'u8[65536]{0}', space=vmem, size = 0x10000, scoped, tag = 'input window, operand 1, single buffered']
    #allocation6 [shape = 's32[1]{0}', space=sflag, size = 0x4, scoped, tag = 'scoped memory for tpu_custom_call.1']
    #allocation7 [shape = 'u8[65536]{0}', space=vmem, size = 0x10000, scoped, tag = 'input window, operand 3, single buffered']
    #allocation8 [shape = 'u8[8192]{0}', space=vmem, size = 0x2000, scoped, tag = 'output window, operand 0, single buffered']
    %10 = vsyncpa [#allocation3], 0
    %11 = vsyncpa [#allocation6], 0
    %12 = vsyncpa [#allocation4], 0
    // Predicated region
    $region2: #{tpu_custom_call.1} parent=1 // pred_check
      _
    $region3: #{tpu_custom_call.1} parent=1 // pred_check_branch
      %14 = sbr.rel (0) target = $region5
    $region4: #{tpu_custom_call.1} parent=1 // pred_region
      %s16 = ssub.s32 256, 256
      %17 = vsyncadd [#allocation3], %s16
      %s18 = sshll.u32 [#allocation2], 4
      %s19 = int_to_ptr.vmem [resolvable:$true] %s18
      %24 = dma.hbm_to_vmem [thread:$0]  %s0, 256, %s19, [#allocation3], 128, 128, 8
    $region5: #{tpu_custom_call.1} parent=1 // pred_fallthru
      _
    // Predicated region
    $region6: #{tpu_custom_call.1} parent=1 // pred_check
      _
    $region7: #{tpu_custom_call.1} parent=1 // pred_check_branch
      %26 = sbr.rel (0) target = $region9
    $region8: #{tpu_custom_call.1} parent=1 // pred_region
      %s28 = ssub.s32 2048, 2048
      %29 = vsyncadd [#allocation6], %s28
      %s30 = sshll.u32 [#allocation5], 4
      %s31 = int_to_ptr.vmem [resolvable:$true] %s30
      %36 = dma.hbm_to_vmem [thread:$0]  %s1, 2048, %s31, [#allocation6], 128, 128, 8
    $region9: #{tpu_custom_call.1} parent=1 // pred_fallthru
      _
    // Predicated region
    $region10: #{tpu_custom_call.1} parent=1 // pred_check
      _
    $region11: #{tpu_custom_call.1} parent=1 // pred_check_branch
      %38 = sbr.rel (0) target = $region13
    $region12: #{tpu_custom_call.1} parent=1 // pred_region
      _
    $region13: #{tpu_custom_call.1} parent=1 // pred_fallthru
      _
    // Predicated region
    $region14: #{tpu_custom_call.1} parent=1 // pred_check
      _
    $region15: #{tpu_custom_call.1} parent=1 // pred_check_branch
      %40 = sbr.rel (0) target = $region17
    $region16: #{tpu_custom_call.1} parent=1 // pred_region
      %s42 = ssub.s32 2048, 2048
      %43 = vsyncadd [#allocation6], %s42
      %s44 = sshll.u32 [#allocation7], 4
      %s45 = int_to_ptr.vmem [resolvable:$true] %s44
      %50 = dma.hbm_to_vmem [thread:$0]  %s3, 2048, %s45, [#allocation6], 128, 128, 8
    $region17: #{tpu_custom_call.1} parent=1 // pred_fallthru
      _
    // Predicated region
    $region18: #{tpu_custom_call.1} parent=1 // pred_check
      _
    $region19: #{tpu_custom_call.1} parent=1 // pred_check_branch
      %52 = sbr.rel (0) target = $region21
    $region20: #{tpu_custom_call.1} parent=1 // pred_region
      _
    $region21: #{tpu_custom_call.1} parent=1 // pred_fallthru
      _
    // Predicated region
    $region22: #{tpu_custom_call.1} parent=1 // pred_check
      _
    $region23: #{tpu_custom_call.1} parent=1 // pred_check_branch
      %54 = sbr.rel (0) target = $region25
    $region24: #{tpu_custom_call.1} parent=1 // pred_region
      %55 = dma.done [#allocation3], 256
    $region25: #{tpu_custom_call.1} parent=1 // pred_fallthru
      _
    // Predicated region
    $region26: #{tpu_custom_call.1} parent=1 // pred_check
      _
    $region27: #{tpu_custom_call.1} parent=1 // pred_check_branch
      %57 = sbr.rel (0) target = $region29
    $region28: #{tpu_custom_call.1} parent=1 // pred_region
      %58 = dma.done [#allocation6], 2048
    $region29: #{tpu_custom_call.1} parent=1 // pred_fallthru
      _
    // Predicated region
    $region30: #{tpu_custom_call.1} parent=1 // pred_check
      _
    $region31: #{tpu_custom_call.1} parent=1 // pred_check_branch
      %60 = sbr.rel (0) target = $region33
    $region32: #{tpu_custom_call.1} parent=1 // pred_region
      %61 = dma.done [#allocation6], 2048
    $region33: #{tpu_custom_call.1} parent=1 // pred_fallthru
      _
    %p62 = scmp.eq.s32.totalorder 0, 0
    // Predicated region
    $region34: #{tpu_custom_call.1} parent=1 // pred_check
      %p63 = pneg %p62
    $region35: #{tpu_custom_call.1} parent=1 // pred_check_branch
      %65 = sbr.rel (%p63) target = $region37
    $region36: #{tpu_custom_call.1} parent=1 // pred_region
      %66 = vst [vmem:[#allocation8] sm:$0xff] 0.0
      %67 = vst [vmem:[#allocation8 + $0x8] sm:$0xff] 0.0
    $region37: #{tpu_custom_call.1} parent=1 // pred_fallthru
      _
    %v68 = vld [vmem:[#allocation2] sm:$0xff]
    %v69 = vld [vmem:[#allocation2 + $0x8] sm:$0xff]
    %v70 = vld [vmem:[#allocation5] sm:$0xff]
    %v71 = vld [vmem:[#allocation5 + $0x8] sm:$0xff]
    %v72 = vld [vmem:[#allocation5 + $0x10] sm:$0xff]
    %v73 = vld [vmem:[#allocation5 + $0x18] sm:$0xff]
    %v74 = vld [vmem:[#allocation5 + $0x20] sm:$0xff]
    %v75 = vld [vmem:[#allocation5 + $0x28] sm:$0xff]
    %v76 = vld [vmem:[#allocation5 + $0x30] sm:$0xff]
    %v77 = vld [vmem:[#allocation5 + $0x38] sm:$0xff]
    %v78 = vld [vmem:[#allocation5 + $0x40] sm:$0xff]
    %v79 = vld [vmem:[#allocation5 + $0x48] sm:$0xff]
    %v80 = vld [vmem:[#allocation5 + $0x50] sm:$0xff]
    %v81 = vld [vmem:[#allocation5 + $0x58] sm:$0xff]
    %v82 = vld [vmem:[#allocation5 + $0x60] sm:$0xff]
    %v83 = vld [vmem:[#allocation5 + $0x68] sm:$0xff]
    %v84 = vld [vmem:[#allocation5 + $0x70] sm:$0xff]
    %v85 = vld [vmem:[#allocation5 + $0x78] sm:$0xff]
    %v86 = vld [vmem:[%s2] sm:$0x1]
    %v88 = vlaneseq
    %v89 = vshrl.u32 %v88, 7
    %v90 = vsub.s32 0, %v89
    %v91 = vrot.slane %v86, %v90
    %93 = vmatprep.subr.mxu0 0.0
    %94 = vmatpush1.msra.mxu0 %v70
    %95 = vmatprep.subr.mxu0 0.0
    %96 = vmatpush1.msra.mxu0 %v71
    %97 = vmatprep.subr.mxu0 0.0
    %98 = vmatpush1.msra.mxu0 %v72
    %99 = vmatprep.subr.mxu0 0.0
    %100 = vmatpush1.msra.mxu0 %v73
    %101 = vmatprep.subr.mxu0 0.0
    %102 = vmatpush1.msra.mxu0 %v74
    %103 = vmatprep.subr.mxu0 0.0
    %104 = vmatpush1.msra.mxu0 %v75
    %105 = vmatprep.subr.mxu0 0.0
    %106 = vmatpush1.msra.mxu0 %v76
    %107 = vmatprep.subr.mxu0 0.0
    %108 = vmatpush1.msra.mxu0 %v77
    %109 = vmatprep.subr.mxu0 0.0
    %110 = vmatpush1.msra.mxu0 %v78
    %111 = vmatprep.subr.mxu0 0.0
    %112 = vmatpush1.msra.mxu0 %v79
    %113 = vmatprep.subr.mxu0 0.0
    %114 = vmatpush1.msra.mxu0 %v80
    %115 = vmatprep.subr.mxu0 0.0
    %116 = vmatpush1.msra.mxu0 %v81
    %117 = vmatprep.subr.mxu0 0.0
    %118 = vmatpush1.msra.mxu0 %v82
    %119 = vmatprep.subr.mxu0 0.0
    %120 = vmatpush1.msra.mxu0 %v83
    %121 = vmatprep.subr.mxu0 0.0
    %122 = vmatpush1.msra.mxu0 %v84
    %123 = vmatprep.subr.mxu0 0.0
    %124 = vmatpush1.msra.mxu0 %v85
    %125 = vmatprep.subr.mxu0 0.0
    %126 = vmatpush1.msra.mxu0 0.0
    %127 = vmatprep.subr.mxu0 0.0
    %128 = vmatpush1.msra.mxu0 0.0
    %129 = vmatprep.subr.mxu0 0.0
    %130 = vmatpush1.msra.mxu0 0.0
    %131 = vmatprep.subr.mxu0 0.0
    %132 = vmatpush1.msra.mxu0 0.0
    %133 = vmatprep.subr.mxu0 0.0
    %134 = vmatpush1.msra.mxu0 0.0
    %135 = vmatprep.subr.mxu0 0.0
    %136 = vmatpush1.msra.mxu0 0.0
    %137 = vmatprep.subr.mxu0 0.0
    %138 = vmatpush1.msra.mxu0 0.0
    %139 = vmatprep.subr.mxu0 0.0
    %140 = vmatpush1.msra.mxu0 0.0
    %141 = vmatprep.subr.mxu0 0.0
    %142 = vmatpush1.msra.mxu0 0.0
    %143 = vmatprep.subr.mxu0 0.0
    %144 = vmatpush1.msra.mxu0 0.0
    %145 = vmatprep.subr.mxu0 0.0
    %146 = vmatpush1.msra.mxu0 0.0
    %147 = vmatprep.subr.mxu0 0.0
    %148 = vmatpush1.msra.mxu0 0.0
    %149 = vmatprep.subr.mxu0 0.0
    %150 = vmatpush1.msra.mxu0 0.0
    %151 = vmatprep.subr.mxu0 0.0
    %152 = vmatpush1.msra.mxu0 0.0
    %153 = vmatprep.subr.mxu0 0.0
    %154 = vmatpush1.msra.mxu0 0.0
    %155 = vmatprep.subr.mxu0 0.0
    %156 = vmatpush1.msra.mxu0 0.0
    %157 = vmatprep.mubr.f32.mxu0 0.0
    %158 = vmatmul.mubr.f32.gmra.mrb[0].mxu0 %v68
    %v159 = vpop.f32.mrb[0].mxu0
    %v160 = vadd.f32 %v91, %v159
    %v161 = vpop.f32.mrb[0].mxu0
    %162 = vmatprep.mubr.f32.mxu0 0.0
    %163 = vmatmul.mubr.f32.gmra.mrb[0].mxu0 %v69
    %v164 = vpop.f32.mrb[0].mxu0
    %v165 = vadd.f32 %v91, %v164
    %v166 = vpop.f32.mrb[0].mxu0
    %167 = vdwg.mxu0
    %v168 = vmul.f32 %v160, 0.5
    %v169 = vmul.f32 %v165, 0.5
    %v170 = vmul.f32 %v160, 0.044715
    %v171 = vmul.f32 %v165, 0.044715
    %v172 = vmul.f32 %v170, %v160
    %v173 = vmul.f32 %v171, %v165
    %v174 = vmul.f32 %v172, %v160
    %v175 = vmul.f32 %v173, %v165
    %v176 = vadd.f32 %v160, %v174
    %v177 = vadd.f32 %v165, %v175
    %v178 = vmul.f32 %v176, 0.7978846
    %v179 = vmul.f32 %v177, 0.7978846
    %v180 = vtanh.pop %v178
    %v181 = vtanh.pop %v179
    %v182 = vadd.f32 %v180, 1.0
    %v183 = vadd.f32 %v181, 1.0
    %v184 = vmul.f32 %v168, %v182
    %v185 = vmul.f32 %v169, %v183
    %v186 = vld [vmem:[#allocation8] sm:$0xff]
    %v187 = vld [vmem:[#allocation8 + $0x8] sm:$0xff]
    %v188 = vld [vmem:[#allocation7] sm:$0xff]
    %v189 = vld [vmem:[#allocation7 + $0x8] sm:$0xff]
    %v190 = vld [vmem:[#allocation7 + $0x10] sm:$0xff]
    %v191 = vld [vmem:[#allocation7 + $0x18] sm:$0xff]
    %v192 = vld [vmem:[#allocation7 + $0x20] sm:$0xff]
    %v193 = vld [vmem:[#allocation7 + $0x28] sm:$0xff]
    %v194 = vld [vmem:[#allocation7 + $0x30] sm:$0xff]
    %v195 = vld [vmem:[#allocation7 + $0x38] sm:$0xff]
    %v196 = vld [vmem:[#allocation7 + $0x40] sm:$0xff]
    %v197 = vld [vmem:[#allocation7 + $0x48] sm:$0xff]
    %v198 = vld [vmem:[#allocation7 + $0x50] sm:$0xff]
    %v199 = vld [vmem:[#allocation7 + $0x58] sm:$0xff]
    %v200 = vld [vmem:[#allocation7 + $0x60] sm:$0xff]
    %v201 = vld [vmem:[#allocation7 + $0x68] sm:$0xff]
    %v202 = vld [vmem:[#allocation7 + $0x70] sm:$0xff]
    %v203 = vld [vmem:[#allocation7 + $0x78] sm:$0xff]
    %204 = vmatprep.subr.mxu0 0.0
    %205 = vmatpush1.msra.mxu0 %v188
    %206 = vmatprep.subr.mxu0 0.0
    %207 = vmatpush1.msra.mxu0 %v189
    %208 = vmatprep.subr.mxu0 0.0
    %209 = vmatpush1.msra.mxu0 %v190
    %210 = vmatprep.subr.mxu0 0.0
    %211 = vmatpush1.msra.mxu0 %v191
    %212 = vmatprep.subr.mxu0 0.0
    %213 = vmatpush1.msra.mxu0 %v192
    %214 = vmatprep.subr.mxu0 0.0
    %215 = vmatpush1.msra.mxu0 %v193
    %216 = vmatprep.subr.mxu0 0.0
    %217 = vmatpush1.msra.mxu0 %v194
    %218 = vmatprep.subr.mxu0 0.0
    %219 = vmatpush1.msra.mxu0 %v195
    %220 = vmatprep.subr.mxu0 0.0
    %221 = vmatpush1.msra.mxu0 %v196
    %222 = vmatprep.subr.mxu0 0.0
    %223 = vmatpush1.msra.mxu0 %v197
    %224 = vmatprep.subr.mxu0 0.0
    %225 = vmatpush1.msra.mxu0 %v198
    %226 = vmatprep.subr.mxu0 0.0
    %227 = vmatpush1.msra.mxu0 %v199
    %228 = vmatprep.subr.mxu0 0.0
    %229 = vmatpush1.msra.mxu0 %v200
    %230 = vmatprep.subr.mxu0 0.0
    %231 = vmatpush1.msra.mxu0 %v201
    %232 = vmatprep.subr.mxu0 0.0
    %233 = vmatpush1.msra.mxu0 %v202
    %234 = vmatprep.subr.mxu0 0.0
    %235 = vmatpush1.msra.mxu0 %v203
    %236 = vmatprep.subr.mxu0 0.0
    %237 = vmatpush1.msra.mxu0 0.0
    %238 = vmatprep.subr.mxu0 0.0
    %239 = vmatpush1.msra.mxu0 0.0
    %240 = vmatprep.subr.mxu0 0.0
    %241 = vmatpush1.msra.mxu0 0.0
    %242 = vmatprep.subr.mxu0 0.0
    %243 = vmatpush1.msra.mxu0 0.0
    %244 = vmatprep.subr.mxu0 0.0
    %245 = vmatpush1.msra.mxu0 0.0
    %246 = vmatprep.subr.mxu0 0.0
    %247 = vmatpush1.msra.mxu0 0.0
    %248 = vmatprep.subr.mxu0 0.0
    %249 = vmatpush1.msra.mxu0 0.0
    %250 = vmatprep.subr.mxu0 0.0
    %251 = vmatpush1.msra.mxu0 0.0
    %252 = vmatprep.subr.mxu0 0.0
    %253 = vmatpush1.msra.mxu0 0.0
    %254 = vmatprep.subr.mxu0 0.0
    %255 = vmatpush1.msra.mxu0 0.0
    %256 = vmatprep.subr.mxu0 0.0
    %257 = vmatpush1.msra.mxu0 0.0
    %258 = vmatprep.subr.mxu0 0.0
    %259 = vmatpush1.msra.mxu0 0.0
    %260 = vmatprep.subr.mxu0 0.0
    %261 = vmatpush1.msra.mxu0 0.0
    %262 = vmatprep.subr.mxu0 0.0
    %263 = vmatpush1.msra.mxu0 0.0
    %264 = vmatprep.subr.mxu0 0.0
    %265 = vmatpush1.msra.mxu0 0.0
    %266 = vmatprep.subr.mxu0 0.0
    %267 = vmatpush1.msra.mxu0 0.0
    %268 = vmatprep.mubr.f32.mxu0 0.0
    %269 = vmatmul.mubr.f32.gmra.mrb[0].mxu0 %v184
    %v270 = vpop.f32.mrb[0].mxu0
    %v271 = vadd.f32 0.0, %v270
    %v272 = vpop.f32.mrb[0].mxu0
    %273 = vmatprep.mubr.f32.mxu0 0.0
    %274 = vmatmul.mubr.f32.gmra.mrb[0].mxu0 %v185
    %v275 = vpop.f32.mrb[0].mxu0
    %v276 = vadd.f32 0.0, %v275
    %v277 = vpop.f32.mrb[0].mxu0
    %278 = vdwg.mxu0
    %v279 = vadd.f32 %v186, %v271
    %v280 = vadd.f32 %v187, %v276
    %281 = vst [vmem:[#allocation8] sm:$0xff] %v279
    %282 = vst [vmem:[#allocation8 + $0x8] sm:$0xff] %v280
    // Predicated region
    $region38: #{tpu_custom_call.1} parent=1 // pred_check
      %p283 = pneg %p62
    $region39: #{tpu_custom_call.1} parent=1 // pred_check_branch
      %285 = sbr.rel (%p283) target = $region41
    $region40: #{tpu_custom_call.1} parent=1 // pred_region
      %v286 = vld [vmem:[#allocation8] sm:$0xff]
      %v287 = vld [vmem:[#allocation8 + $0x8] sm:$0xff]
      %v288 = vld [vmem:[%s4] sm:$0x1]
      %v290 = vlaneseq
      %v291 = vshrl.u32 %v290, 7
      %v292 = vsub.s32 0, %v291
      %v293 = vrot.slane %v288, %v292
      %v295 = vadd.f32 %v286, %v293
      %v296 = vadd.f32 %v287, %v293
      %297 = vst [vmem:[#allocation8] sm:$0xff] %v295
      %298 = vst [vmem:[#allocation8 + $0x8] sm:$0xff] %v296
    $region41: #{tpu_custom_call.1} parent=1 // pred_fallthru
      _
    // Predicated region
    $region42: #{tpu_custom_call.1} parent=1 // pred_check
      _
    $region43: #{tpu_custom_call.1} parent=1 // pred_check_branch
      %300 = sbr.rel (0) target = $region45
    $region44: #{tpu_custom_call.1} parent=1 // pred_region
      %s302 = ssub.s32 256, 256
      %303 = vsyncadd [#allocation4], %s302
      %s304 = sshll.u32 [#allocation8], 4
      %s305 = int_to_ptr.vmem [resolvable:$true] %s304
      %310 = dma.vmem_to_hbm [thread:$0]  %s305, 256, %s5, [#allocation4], 128, 128, 8
    $region45: #{tpu_custom_call.1} parent=1 // pred_fallthru
      _
    // Predicated region
    $region46: #{tpu_custom_call.1} parent=1 // pred_check
      _
    $region47: #{tpu_custom_call.1} parent=1 // pred_check_branch
      %312 = sbr.rel (0) target = $region49
    $region48: #{tpu_custom_call.1} parent=1 // pred_region
      %313 = dma.done [#allocation4], 256
    $region49: #{tpu_custom_call.1} parent=1 // pred_fallthru
      _
    %314 = vsyncpa [#allocation3], 1
    %315 = vsyncpa [#allocation6], 1
    %316 = vsyncpa [#allocation4], 1

</llo_original>
